<compile_context>
chip_gen: v6e
topology: v6e:2x2x1
jax: 0.10.0
libtpu: 0.0.40
codegen_flags: <defaults>
</compile_context>

<pallas_src>
import math

import jax
import jax.numpy as jnp
from jax.experimental import pallas as pl
from jax.experimental.pallas import tpu as pltpu


# ---------------------------------------------------------------------------
# Parameter init (mirrors __init__; dead in forward, kept out of the jit).
# ---------------------------------------------------------------------------
def kaiming_normal_fan_out(key, shape):
    # shape = (out_ch, in_ch, kh, kw); fan_out = out_ch * kh * kw
    fan_out = shape[0] * shape[2] * shape[3]
    std = math.sqrt(2.0) / math.sqrt(fan_out)  # gain for leaky_relu(a=0)
    return jax.random.normal(key, shape, dtype=jnp.float32) * std


def make_shared_parameters(key, C_in, C_out, kernel, expansion=6):
    k1, k2, k3 = jax.random.split(key, 3)
    return {
        "conv1": kaiming_normal_fan_out(k1, (C_in * expansion, C_in, 1, 1)),
        "conv2": kaiming_normal_fan_out(k2, (C_in * expansion, 1, kernel, kernel)),
        "conv3": kaiming_normal_fan_out(k3, (C_out, C_in * expansion, 1, 1)),
    }


# ---------------------------------------------------------------------------
# Pallas kernel: pure ref-to-ref copy (minimal body -> HBM-roofline bound).
# ---------------------------------------------------------------------------
def copy_kernel(x_ref, o_ref):
    o_ref[...] = x_ref[...]


_TILE_BYTE_BUDGET = 4 << 20   # ~4 MiB/tile; in+out double-buffered ~= 16 MiB
_VMEM_LIMIT_BYTES = 32 << 20  # explicit scoped VMEM limit, safe on v5e/v6e/v7x
_MIN_SPLIT_BYTES = 2 << 20    # tensors >= 2 MiB get >= 2 grid steps (v7x: 2 TCs)

# Wide lane-dense views first (unmasked vst, large DMA descriptors); the
# sub-128 tail entries are only a hardened fallback for odd element counts.
_COL_CANDIDATES = (8192, 4096, 2048, 1024, 512, 256, 128,
                   64, 32, 16, 8, 4, 2, 1)


def _lane_dense_view(total):
    """Pick (rows, cols) with cols | total, preferring wide lane-dense cols."""
    for cols in _COL_CANDIDATES:
        if total % cols == 0:
            return total // cols, cols
    return total, 1  # unreachable (cols=1 always divides), kept for clarity


def _choose_block_rows(rows, cols, itemsize, total_bytes):
    """Rows per tile such that:
       (a) the tile stays within the ~4 MiB byte budget,
       (b) it divides rows exactly when possible (no masked trailing block),
       (c) it is a multiple of 8 sublanes (or the full row extent),
       (d) tensors worth splitting get >= 2 grid steps (v7x megacore)."""
    tile_bytes_full = rows * cols * itemsize
    small = tile_bytes_full <= _TILE_BYTE_BUDGET and total_bytes < _MIN_SPLIT_BYTES
    if rows <= 8 or small:
        return rows  # single full-extent block
    budget_rows = max(8, (_TILE_BYTE_BUDGET // (cols * itemsize)) // 8 * 8)
    cap = min(max(8, rows // 8 * 8), budget_rows)
    if total_bytes >= _MIN_SPLIT_BYTES:
        cap = min(cap, max(8, (rows // 2) // 8 * 8))  # ensure >= 2 grid steps
    if rows % 8 == 0:
        best = 8
        d = 8
        while d <= cap:
            if rows % d == 0:
                best = d  # largest exact divisor of rows within the cap
            d += 8
        return best
    # rows not a multiple of 8: accept one masked partial block on the last step
    return cap


def shared_parameters_forward(x, *, donate_input=False):
    """Identity forward of the reference module.

    The optimal implementation is simply `return x` (no kernel, no HBM
    traffic).  The Pallas copy below is kept because the harness requires a
    kernel launch; it is tiled to run at the HBM roofline on v5e/v6e/v7x.
    Set donate_input=True ONLY when the caller donates x's buffer
    (jit(..., donate_argnums=...)); otherwise aliasing would force XLA to
    insert a defensive pre-copy and double the HBM traffic.
    """
    total = x.size
    if total == 0:
        return x

    rows, cols = _lane_dense_view(total)
    x2d = x.reshape(rows, cols)
    itemsize = jnp.dtype(x.dtype).itemsize
    block_rows = _choose_block_rows(rows, cols, itemsize, total * itemsize)
    grid = (pl.cdiv(rows, block_rows),)

    alias_kwargs = {"input_output_aliases": {0: 0}} if donate_input else {}

    y2d = pl.pallas_call(
        copy_kernel,
        out_shape=jax.ShapeDtypeStruct((rows, cols), x.dtype),
        grid=grid,
        in_specs=[pl.BlockSpec((block_rows, cols), lambda i: (i, 0))],
        out_specs=pl.BlockSpec((block_rows, cols), lambda i: (i, 0)),
        compiler_params=pltpu.CompilerParams(
            dimension_semantics=("parallel",),
            vmem_limit_bytes=_VMEM_LIMIT_BYTES,
        ),
        **alias_kwargs,
    )(x2d)
    return y2d.reshape(x.shape)


if __name__ == "__main__":
    key = jax.random.PRNGKey(0)
    k_param, k_x = jax.random.split(key)

    B, C_in, H, W = 2, 4, 16, 16
    C_out, kernel = 4, 3

    # Built to mirror __init__, intentionally NOT passed into the forward path.
    params = make_shared_parameters(k_param, C_in, C_out, kernel, expansion=6)

    x = jax.random.normal(k_x, (B, C_in, H, W), dtype=jnp.float32)

    # Default: out-of-place copy (no alias) since x is not donated here.
    fwd = jax.jit(shared_parameters_forward)
    y = jax.block_until_ready(fwd(x))

    assert y.shape == x.shape and y.dtype == x.dtype
    assert bool(jnp.all(y == x))
    print("KERNEL_OK")
</pallas_src>

<mosaic_0001>
module attributes {stable_mosaic.version = 11 : i64} {
  func.func @copy_kernel(%arg0: i32, %arg1: memref<1x2048xf32, #tpu.memory_space<vmem>>, %arg2: memref<1x2048xf32, #tpu.memory_space<vmem>>) attributes {dimension_semantics = [#tpu.dimension_semantics<parallel>], iteration_bounds = array<i64: 1>, scalar_prefetch = 0 : i64, scratch_operands = 0 : i64, tpu.core_type = #tpu.core_type<tc>, window_params = [{transform_indices = @transform_0, window_bounds = array<i64: 1, 2048>}, {transform_indices = @transform_1, window_bounds = array<i64: 1, 2048>}]} {
    %c0 = arith.constant 0 : index
    %c0_0 = arith.constant 0 : index
    %0 = vector.load %arg1[%c0, %c0_0] : memref<1x2048xf32, #tpu.memory_space<vmem>>, vector<1x2048xf32>
    %c0_1 = arith.constant 0 : index
    %c0_2 = arith.constant 0 : index
    %1 = vector.load %arg2[%c0_1, %c0_2] : memref<1x2048xf32, #tpu.memory_space<vmem>>, vector<1x2048xf32>
    tpu.vector_store %arg2[%c0_1, %c0_2], %0 {strides = array<i32>} : memref<1x2048xf32, #tpu.memory_space<vmem>>, vector<1x2048xf32>,
    return
  }
  func.func @transform_0(%arg0: i32) -> (i32, i32) {
    %c0_i32 = arith.constant 0 : i32
    %c0_i32_0 = arith.constant 0 : i32
    return %arg0, %c0_i32 : i32, i32
  }
  func.func @transform_1(%arg0: i32) -> (i32, i32) {
    %c0_i32 = arith.constant 0 : i32
    %c0_i32_0 = arith.constant 0 : i32
    return %arg0, %c0_i32 : i32, i32
  }
}

</mosaic_0001>

<llo_original>
// kernel: shared_parameters_forward.1
$region0: #{shared_parameters_forward.1}
  #allocation0 [shape = 'u32[]', space=smem, size = 0x4, offset = 0x4, fixed_abs, tag = 'smem constant byte address 0x4 - core index']
  #allocation1 [shape = 'u32[144,128]{1,0:T(1,128)}', space=vmem, size = 0x12000, scoped, tag = 'internal scratch']
  %s0 = inlined_call_operand.vmem [shape: f32[1,2048], index: 0, kind: input, shape index: {}]
  %s1 = inlined_call_operand.vmem [shape: f32[1,2048], index: 1, kind: output, shape index: {}]
  %s2 = sld [smem:[#allocation0]]
  $region14: #{shared_parameters_forward.1} parent=0
    _
  %s4 = ssub.s32 1, %s2
  %s5 = scalar_select 0, %s4, %s2
  // Predicated region
  $region2: #{shared_parameters_forward.1} parent=0 // pred_check
    _
  $region3: #{shared_parameters_forward.1} parent=0 // pred_check_branch
    %7 = sbr.rel (0) target = $region5
  $region4: #{shared_parameters_forward.1} parent=0 // pred_region
    _
  $region5: #{shared_parameters_forward.1} parent=0 // pred_fallthru
    _
  %v8 = vld [vmem:[%s0] sm:$0xff]
  %v9 = vld [vmem:[%s0 + $0x8] sm:$0xff]
  %10 = vst [vmem:[%s1] sm:$0xff] %v8
  %11 = vst [vmem:[%s1 + $0x8] sm:$0xff] %v9
  // Predicated region
  $region6: #{shared_parameters_forward.1} parent=0 // pred_check
    _
  $region7: #{shared_parameters_forward.1} parent=0 // pred_check_branch
    %13 = sbr.rel (0) target = $region9
  $region8: #{shared_parameters_forward.1} parent=0 // pred_region
    _
  $region9: #{shared_parameters_forward.1} parent=0 // pred_fallthru
    _
  // Predicated region
  $region10: #{shared_parameters_forward.1} parent=0 // pred_check
    _
  $region11: #{shared_parameters_forward.1} parent=0 // pred_check_branch
    %15 = sbr.rel (0) target = $region13
  $region12: #{shared_parameters_forward.1} parent=0 // pred_region
    _
  $region13: #{shared_parameters_forward.1} parent=0 // pred_fallthru
    _

</llo_original>
